<compile_context>
chip_gen: v5e
topology: v5e:2x2
jax: 0.10.0
libtpu: 0.0.40
codegen_flags: <defaults>
</compile_context>

<pallas_src>
import jax
import jax.numpy as jnp
from jax.experimental import pallas as pl
from jax.experimental.pallas import tpu as pltpu


def downsample_kernel(x_ref, wbig_ref, shift_ref, wlbig_ref, bias_ref, o_ref):
    # x_ref:     (Cin*L2,  Bblk)   batch block, batch in lanes
    # wbig_ref:  (Cout*L2, Cin*L2) kron(conv_w * bn_scale, I_L2)
    # shift_ref: (Cout*L2, 1)      BN shift repeated over L2
    # wlbig_ref: (Cout*L1, Cout*L2) kron(I_Cout, linear_w)
    # bias_ref:  (Cout*L1, 1)      linear bias tiled over Cout
    # o_ref:     (Cout*L1, Bblk)
    h = jnp.dot(wbig_ref[...], x_ref[...],
                preferred_element_type=jnp.float32)          # (Cout*L2, Bblk)
    t = jnp.tanh(h + shift_ref[...])                         # f32, EUP tanh
    out = jnp.dot(wlbig_ref[...], t.astype(wlbig_ref.dtype),
                  preferred_element_type=jnp.float32)        # (Cout*L1, Bblk)
    out = out + bias_ref[...]
    o_ref[...] = out.astype(o_ref.dtype)


def _round_up(x, m):
    return (x + m - 1) // m * m


def downsample_forward(x, conv_w, bn_gamma, bn_beta, bn_mean, bn_var,
                       lin_w, lin_b, eps=1e-5, block_b=512, mxu_dtype=None):
    """x: (B, Cin, L2); conv_w: (Cout, Cin); lin_w: (L1, L2); lin_b: (L1,).

    mxu_dtype: optionally cast x / matmul weights to e.g. jnp.bfloat16 for the
    MXU on v6e/v7x (accumulation stays f32).  None keeps exact f32 math.
    """
    B, Cin, L2 = x.shape
    Cout = conv_w.shape[0]
    L1 = lin_w.shape[0]
    out_dtype = x.dtype

    # Batch block: multiple of 128 for lane-dense, unmasked stores; pad the
    # batch axis instead of shrinking the block (no prime-B perf cliff).
    bblk = max(128, min(_round_up(block_b, 128), _round_up(B, 128)))
    Bp = _round_up(B, bblk)
    grid = (Bp // bblk,)

    # ---- wrapper-side layout plumbing (plain XLA) -------------------------
    # x: (B, Cin, L2) -> (Cin*L2, B) with row index c*L2 + l, batch in lanes.
    x2 = jnp.transpose(x, (1, 2, 0)).reshape(Cin * L2, B)
    if Bp != B:
        x2 = jnp.pad(x2, ((0, 0), (0, Bp - B)))

    # Fold BatchNorm (inference) into the conv weight + a per-channel shift.
    scale = bn_gamma / jnp.sqrt(bn_var + eps)                     # (Cout,)
    wcs = conv_w * scale[:, None]                                 # (Cout, Cin)
    shift = bn_beta - bn_mean * scale                             # (Cout,)

    # Stage-1 weight: kron(wcs, I_L2)[o*L2+l, c*L2+l'] = wcs[o,c] * delta(l,l')
    w_big = jnp.kron(wcs, jnp.eye(L2, dtype=wcs.dtype))           # (Cout*L2, Cin*L2)
    shift_big = jnp.repeat(shift, L2).reshape(Cout * L2, 1)       # (Cout*L2, 1)

    # Stage-2 weight: kron(I_Cout, lin_w)[o*L1+j, o'*L2+l] = delta(o,o')*W[j,l]
    wl_big = jnp.kron(jnp.eye(Cout, dtype=lin_w.dtype), lin_w)    # (Cout*L1, Cout*L2)
    bias_big = jnp.tile(lin_b, Cout).reshape(Cout * L1, 1)        # (Cout*L1, 1)

    if mxu_dtype is not None:
        x2 = x2.astype(mxu_dtype)
        w_big = w_big.astype(mxu_dtype)
        wl_big = wl_big.astype(mxu_dtype)
    shift_big = shift_big.astype(jnp.float32)
    bias_big = bias_big.astype(jnp.float32)

    out2 = pl.pallas_call(
        downsample_kernel,
        out_shape=jax.ShapeDtypeStruct((Cout * L1, Bp), out_dtype),
        grid_spec=pltpu.PrefetchScalarGridSpec(
            num_scalar_prefetch=0,
            grid=grid,
            in_specs=[
                pl.BlockSpec((Cin * L2, bblk), lambda b: (0, b)),      # x slab
                pl.BlockSpec((Cout * L2, Cin * L2), lambda b: (0, 0)),  # W_big
                pl.BlockSpec((Cout * L2, 1), lambda b: (0, 0)),         # BN shift
                pl.BlockSpec((Cout * L1, Cout * L2), lambda b: (0, 0)),  # WL_big
                pl.BlockSpec((Cout * L1, 1), lambda b: (0, 0)),         # linear bias
            ],
            out_specs=pl.BlockSpec((Cout * L1, bblk), lambda b: (0, b)),
        ),
        compiler_params=pltpu.CompilerParams(
            dimension_semantics=("parallel",),
            vmem_limit_bytes=32 * 1024 * 1024,
        ),
    )(x2, w_big, shift_big, wl_big, bias_big)

    # (Cout*L1, Bp) -> (B, Cout, L1)
    out = out2[:, :B].reshape(Cout, L1, B)
    return jnp.transpose(out, (2, 0, 1))


def downsample_reference(x, conv_w, bn_gamma, bn_beta, bn_mean, bn_var,
                         lin_w, lin_b, eps=1e-5):
    # Plain-JAX reference mirroring the PyTorch module (BN in eval mode).
    y = jnp.einsum('oc,bcl->bol', conv_w, x)
    y = (y - bn_mean[None, :, None]) / jnp.sqrt(bn_var[None, :, None] + eps)
    y = y * bn_gamma[None, :, None] + bn_beta[None, :, None]
    y = jnp.tanh(y)
    out = jnp.einsum('bol,jl->boj', y, lin_w) + lin_b[None, None, :]
    return out


if __name__ == "__main__":
    # Small shapes consistent with the module: Conv1d over (B, Cin, L2),
    # Linear(len2 -> len1) over the last dim.
    B, Cin, Cout, L2, L1 = 2, 4, 8, 16, 12

    key = jax.random.PRNGKey(0)
    k_x, k_cw, k_lw, k_bn = jax.random.split(key, 4)

    x = jax.random.normal(k_x, (B, Cin, L2), dtype=jnp.float32)

    # Conv1d(k=1, bias=False) weight: PyTorch shape (Cout, Cin, 1) -> squeeze.
    conv_bound = 1.0 / jnp.sqrt(Cin * 1.0)
    conv_w = jax.random.uniform(k_cw, (Cout, Cin), jnp.float32,
                                -conv_bound, conv_bound)

    # BatchNorm1d(Cout) params / running stats (inference mode).  Use
    # nontrivial stats so the BN folding path is actually exercised.
    bn_gamma = 1.0 + 0.1 * jax.random.normal(k_bn, (Cout,), jnp.float32)
    bn_beta = 0.05 * jnp.ones((Cout,), jnp.float32)
    bn_mean = 0.1 * jnp.ones((Cout,), jnp.float32)
    bn_var = jnp.ones((Cout,), jnp.float32)

    # Linear(L2 -> L1): xavier_uniform_ weight, zero bias (as in the module).
    xav_bound = jnp.sqrt(6.0 / (L1 + L2))
    lin_w = jax.random.uniform(k_lw, (L1, L2), jnp.float32,
                               -xav_bound, xav_bound)
    lin_b = jnp.zeros((L1,), jnp.float32)

    out = downsample_forward(x, conv_w, bn_gamma, bn_beta, bn_mean, bn_var,
                             lin_w, lin_b)
    out = jax.block_until_ready(out)

    ref = downsample_reference(x, conv_w, bn_gamma, bn_beta, bn_mean, bn_var,
                               lin_w, lin_b)
    assert out.shape == (B, Cout, L1), out.shape
    assert jnp.allclose(out, ref, atol=1e-5, rtol=1e-5), \
        float(jnp.max(jnp.abs(out - ref)))

    print("KERNEL_OK")
</pallas_src>

<mosaic_0001>
module attributes {stable_mosaic.version = 11 : i64} {
  func.func @downsample_kernel(%arg0: i32, %arg1: memref<64x128xf32, #tpu.memory_space<vmem>>, %arg2: memref<128x64xf32, #tpu.memory_space<vmem>>, %arg3: memref<128x1xf32, #tpu.memory_space<vmem>>, %arg4: memref<96x128xf32, #tpu.memory_space<vmem>>, %arg5: memref<96x1xf32, #tpu.memory_space<vmem>>, %arg6: memref<96x128xf32, #tpu.memory_space<vmem>>) attributes {dimension_semantics = [#tpu.dimension_semantics<parallel>], iteration_bounds = array<i64: 1>, scalar_prefetch = 0 : i64, scratch_operands = 0 : i64, tpu.core_type = #tpu.core_type<tc>, window_params = [{transform_indices = @transform_0, window_bounds = array<i64: 64, 128>}, {pipeline_mode = #tpu.pipeline_mode<synchronous>, transform_indices = @transform_1, window_bounds = array<i64: 128, 64>}, {pipeline_mode = #tpu.pipeline_mode<synchronous>, transform_indices = @transform_2, window_bounds = array<i64: 128, 1>}, {pipeline_mode = #tpu.pipeline_mode<synchronous>, transform_indices = @transform_3, window_bounds = array<i64: 96, 128>}, {pipeline_mode = #tpu.pipeline_mode<synchronous>, transform_indices = @transform_4, window_bounds = array<i64: 96, 1>}, {transform_indices = @transform_5, window_bounds = array<i64: 96, 128>}]} {
    %c0 = arith.constant 0 : index
    %c0_0 = arith.constant 0 : index
    %0 = vector.load %arg2[%c0, %c0_0] : memref<128x64xf32, #tpu.memory_space<vmem>>, vector<128x64xf32>
    %c0_1 = arith.constant 0 : index
    %c0_2 = arith.constant 0 : index
    %1 = vector.load %arg1[%c0_1, %c0_2] : memref<64x128xf32, #tpu.memory_space<vmem>>, vector<64x128xf32>
    %cst = arith.constant dense<0.000000e+00> : vector<128x128xf32>
    %2 = tpu.matmul %0, %1, %cst {dimension_numbers = #tpu.dot_dimension_numbers<[1], [0], [0], [1], [0, 0, 1, 1], [], []>} : vector<128x64xf32>, vector<64x128xf32>, vector<128x128xf32> -> vector<128x128xf32>
    %c0_3 = arith.constant 0 : index
    %c0_4 = arith.constant 0 : index
    %3 = vector.load %arg3[%c0_3, %c0_4] : memref<128x1xf32, #tpu.memory_space<vmem>>, vector<128x1xf32>
    %4 = vector.broadcast %3 : vector<128x1xf32> to vector<128x128xf32>
    %5 = arith.addf %2, %4 : vector<128x128xf32>
    %6 = math.tanh %5 : vector<128x128xf32>
    %c0_5 = arith.constant 0 : index
    %c0_6 = arith.constant 0 : index
    %7 = vector.load %arg4[%c0_5, %c0_6] : memref<96x128xf32, #tpu.memory_space<vmem>>, vector<96x128xf32>
    %cst_7 = arith.constant dense<0.000000e+00> : vector<96x128xf32>
    %8 = tpu.matmul %7, %6, %cst_7 {dimension_numbers = #tpu.dot_dimension_numbers<[1], [0], [0], [1], [0, 0, 1, 1], [], []>} : vector<96x128xf32>, vector<128x128xf32>, vector<96x128xf32> -> vector<96x128xf32>
    %c0_8 = arith.constant 0 : index
    %c0_9 = arith.constant 0 : index
    %9 = vector.load %arg5[%c0_8, %c0_9] : memref<96x1xf32, #tpu.memory_space<vmem>>, vector<96x1xf32>
    %10 = vector.broadcast %9 : vector<96x1xf32> to vector<96x128xf32>
    %11 = arith.addf %8, %10 : vector<96x128xf32>
    %c0_10 = arith.constant 0 : index
    %c0_11 = arith.constant 0 : index
    %12 = vector.load %arg6[%c0_10, %c0_11] : memref<96x128xf32, #tpu.memory_space<vmem>>, vector<96x128xf32>
    tpu.vector_store %arg6[%c0_10, %c0_11], %11 {strides = array<i32>} : memref<96x128xf32, #tpu.memory_space<vmem>>, vector<96x128xf32>,
    return
  }
  func.func @transform_0(%arg0: i32) -> (i32, i32) {
    %c0_i32 = arith.constant 0 : i32
    %c0_i32_0 = arith.constant 0 : i32
    return %c0_i32, %arg0 : i32, i32
  }
  func.func @transform_1(%arg0: i32) -> (i32, i32) {
    %c0_i32 = arith.constant 0 : i32
    %c0_i32_0 = arith.constant 0 : i32
    %c0_i32_1 = arith.constant 0 : i32
    return %c0_i32, %c0_i32_0 : i32, i32
  }
  func.func @transform_2(%arg0: i32) -> (i32, i32) {
    %c0_i32 = arith.constant 0 : i32
    %c0_i32_0 = arith.constant 0 : i32
    %c0_i32_1 = arith.constant 0 : i32
    return %c0_i32, %c0_i32_0 : i32, i32
  }
  func.func @transform_3(%arg0: i32) -> (i32, i32) {
    %c0_i32 = arith.constant 0 : i32
    %c0_i32_0 = arith.constant 0 : i32
    %c0_i32_1 = arith.constant 0 : i32
    return %c0_i32, %c0_i32_0 : i32, i32
  }
  func.func @transform_4(%arg0: i32) -> (i32, i32) {
    %c0_i32 = arith.constant 0 : i32
    %c0_i32_0 = arith.constant 0 : i32
    %c0_i32_1 = arith.constant 0 : i32
    return %c0_i32, %c0_i32_0 : i32, i32
  }
  func.func @transform_5(%arg0: i32) -> (i32, i32) {
    %c0_i32 = arith.constant 0 : i32
    %c0_i32_0 = arith.constant 0 : i32
    return %c0_i32, %arg0 : i32, i32
  }
}

</mosaic_0001>

<llo_original>
// kernel: tpu_custom_call.1
$region0: #{tpu_custom_call.1}
  #allocation0 [shape = 'u32[]', space=smem, size = 0x4, offset = 0x4, fixed_abs, tag = 'smem constant byte address 0x4 - core index']
  #allocation1 [shape = 'u32[72,128]{1,0:T(1,128)}', space=vmem, size = 0x9000, scoped, tag = 'internal scratch']
  %s0 = inlined_call_operand.vmem [shape: f32[64,128], index: 0, kind: input, shape index: {}]
  %s1 = inlined_call_operand.vmem [shape: f32[128,64], index: 1, kind: input, shape index: {}]
  %s2 = inlined_call_operand.vmem [shape: f32[128,1], index: 2, kind: input, shape index: {}]
  %s3 = inlined_call_operand.vmem [shape: f32[96,128], index: 3, kind: input, shape index: {}]
  %s4 = inlined_call_operand.vmem [shape: f32[96,1], index: 4, kind: input, shape index: {}]
  %s5 = inlined_call_operand.hbm [shape: f32[96,128], index: 5, kind: output, shape index: {}]
  %s6 = sld [smem:[#allocation0]]
  $region30: #{tpu_custom_call.1} parent=0
    _
  %s8 = ssub.s32 1, %s6
  %s9 = scalar_select 0, %s8, %s6
  $region1: #{tpu_custom_call.1} parent=0
    #allocation2 [shape = 'u8[49152]{0}', space=vmem, size = 0xc000, scoped, tag = 'output window, operand 0, single buffered']
    #allocation3 [shape = 's32[1]{0}', space=sflag, size = 0x4, scoped, tag = 'scoped memory for tpu_custom_call.1']
    %10 = vsyncpa [#allocation3], 0
    // Predicated region
    $region2: #{tpu_custom_call.1} parent=1 // pred_check
      _
    $region3: #{tpu_custom_call.1} parent=1 // pred_check_branch
      %12 = sbr.rel (0) target = $region5
    $region4: #{tpu_custom_call.1} parent=1 // pred_region
      _
    $region5: #{tpu_custom_call.1} parent=1 // pred_fallthru
      _
    // Predicated region
    $region6: #{tpu_custom_call.1} parent=1 // pred_check
      _
    $region7: #{tpu_custom_call.1} parent=1 // pred_check_branch
      %14 = sbr.rel (0) target = $region9
    $region8: #{tpu_custom_call.1} parent=1 // pred_region
      _
    $region9: #{tpu_custom_call.1} parent=1 // pred_fallthru
      _
    // Predicated region
    $region10: #{tpu_custom_call.1} parent=1 // pred_check
      _
    $region11: #{tpu_custom_call.1} parent=1 // pred_check_branch
      %16 = sbr.rel (0) target = $region13
    $region12: #{tpu_custom_call.1} parent=1 // pred_region
      _
    $region13: #{tpu_custom_call.1} parent=1 // pred_fallthru
      _
    // Predicated region
    $region14: #{tpu_custom_call.1} parent=1 // pred_check
      _
    $region15: #{tpu_custom_call.1} parent=1 // pred_check_branch
      %18 = sbr.rel (0) target = $region17
    $region16: #{tpu_custom_call.1} parent=1 // pred_region
      _
    $region17: #{tpu_custom_call.1} parent=1 // pred_fallthru
      _
    // Predicated region
    $region18: #{tpu_custom_call.1} parent=1 // pred_check
      _
    $region19: #{tpu_custom_call.1} parent=1 // pred_check_branch
      %20 = sbr.rel (0) target = $region21
    $region20: #{tpu_custom_call.1} parent=1 // pred_region
      _
    $region21: #{tpu_custom_call.1} parent=1 // pred_fallthru
      _
    %v21 = vld [vmem:[%s1] sm:$0xff]
    %v22 = vld [vmem:[%s1 + $0x8] sm:$0xff]
    %v23 = vld [vmem:[%s1 + $0x10] sm:$0xff]
    %v24 = vld [vmem:[%s1 + $0x18] sm:$0xff]
    %v25 = vld [vmem:[%s1 + $0x20] sm:$0xff]
    %v26 = vld [vmem:[%s1 + $0x28] sm:$0xff]
    %v27 = vld [vmem:[%s1 + $0x30] sm:$0xff]
    %v28 = vld [vmem:[%s1 + $0x38] sm:$0xff]
    %v29 = vld [vmem:[%s1 + $0x40] sm:$0xff]
    %v30 = vld [vmem:[%s1 + $0x48] sm:$0xff]
    %v31 = vld [vmem:[%s1 + $0x50] sm:$0xff]
    %v32 = vld [vmem:[%s1 + $0x58] sm:$0xff]
    %v33 = vld [vmem:[%s1 + $0x60] sm:$0xff]
    %v34 = vld [vmem:[%s1 + $0x68] sm:$0xff]
    %v35 = vld [vmem:[%s1 + $0x70] sm:$0xff]
    %v36 = vld [vmem:[%s1 + $0x78] sm:$0xff]
    %v37 = vld [vmem:[%s0] sm:$0xff]
    %v38 = vld [vmem:[%s0 + $0x8] sm:$0xff]
    %v39 = vld [vmem:[%s0 + $0x10] sm:$0xff]
    %v40 = vld [vmem:[%s0 + $0x18] sm:$0xff]
    %v41 = vld [vmem:[%s0 + $0x20] sm:$0xff]
    %v42 = vld [vmem:[%s0 + $0x28] sm:$0xff]
    %v43 = vld [vmem:[%s0 + $0x30] sm:$0xff]
    %v44 = vld [vmem:[%s0 + $0x38] sm:$0xff]
    %v45 = vld [vmem:[%s2] sm:$0xff]
    %v46 = vld [vmem:[%s2 + $0x8] sm:$0xff]
    %v47 = vld [vmem:[%s2 + $0x10] sm:$0xff]
    %v48 = vld [vmem:[%s2 + $0x18] sm:$0xff]
    %v49 = vld [vmem:[%s2 + $0x20] sm:$0xff]
    %v50 = vld [vmem:[%s2 + $0x28] sm:$0xff]
    %v51 = vld [vmem:[%s2 + $0x30] sm:$0xff]
    %v52 = vld [vmem:[%s2 + $0x38] sm:$0xff]
    %v53 = vld [vmem:[%s2 + $0x40] sm:$0xff]
    %v54 = vld [vmem:[%s2 + $0x48] sm:$0xff]
    %v55 = vld [vmem:[%s2 + $0x50] sm:$0xff]
    %v56 = vld [vmem:[%s2 + $0x58] sm:$0xff]
    %v57 = vld [vmem:[%s2 + $0x60] sm:$0xff]
    %v58 = vld [vmem:[%s2 + $0x68] sm:$0xff]
    %v59 = vld [vmem:[%s2 + $0x70] sm:$0xff]
    %v60 = vld [vmem:[%s2 + $0x78] sm:$0xff]
    %62 = vset.pattern.permute.xlu0 0
    %63 = vperm.xlu0 %62, %v45
    %v64 = vpop.permute.xlu0 %63
    %67 = vset.pattern.permute.xlu0 0
    %68 = vperm.xlu0 %67, %v46
    %v69 = vpop.permute.xlu0 %68
    %72 = vset.pattern.permute.xlu0 0
    %73 = vperm.xlu0 %72, %v47
    %v74 = vpop.permute.xlu0 %73
    %77 = vset.pattern.permute.xlu0 0
    %78 = vperm.xlu0 %77, %v48
    %v79 = vpop.permute.xlu0 %78
    %82 = vset.pattern.permute.xlu0 0
    %83 = vperm.xlu0 %82, %v49
    %v84 = vpop.permute.xlu0 %83
    %87 = vset.pattern.permute.xlu0 0
    %88 = vperm.xlu0 %87, %v50
    %v89 = vpop.permute.xlu0 %88
    %92 = vset.pattern.permute.xlu0 0
    %93 = vperm.xlu0 %92, %v51
    %v94 = vpop.permute.xlu0 %93
    %97 = vset.pattern.permute.xlu0 0
    %98 = vperm.xlu0 %97, %v52
    %v99 = vpop.permute.xlu0 %98
    %102 = vset.pattern.permute.xlu0 0
    %103 = vperm.xlu0 %102, %v53
    %v104 = vpop.permute.xlu0 %103
    %107 = vset.pattern.permute.xlu0 0
    %108 = vperm.xlu0 %107, %v54
    %v109 = vpop.permute.xlu0 %108
    %112 = vset.pattern.permute.xlu0 0
    %113 = vperm.xlu0 %112, %v55
    %v114 = vpop.permute.xlu0 %113
    %117 = vset.pattern.permute.xlu0 0
    %118 = vperm.xlu0 %117, %v56
    %v119 = vpop.permute.xlu0 %118
    %122 = vset.pattern.permute.xlu0 0
    %123 = vperm.xlu0 %122, %v57
    %v124 = vpop.permute.xlu0 %123
    %127 = vset.pattern.permute.xlu0 0
    %128 = vperm.xlu0 %127, %v58
    %v129 = vpop.permute.xlu0 %128
    %132 = vset.pattern.permute.xlu0 0
    %133 = vperm.xlu0 %132, %v59
    %v134 = vpop.permute.xlu0 %133
    %137 = vset.pattern.permute.xlu0 0
    %138 = vperm.xlu0 %137, %v60
    %v139 = vpop.permute.xlu0 %138
    %vm141 = vcmask 523264
    %v143 = vsel %vm141, %v21, 0
    %v146 = vsel %vm141, %v22, 0
    %v149 = vsel %vm141, %v23, 0
    %v152 = vsel %vm141, %v24, 0
    %v155 = vsel %vm141, %v25, 0
    %v158 = vsel %vm141, %v26, 0
    %v161 = vsel %vm141, %v27, 0
    %v164 = vsel %vm141, %v28, 0
    %v167 = vsel %vm141, %v29, 0
    %v170 = vsel %vm141, %v30, 0
    %v173 = vsel %vm141, %v31, 0
    %v176 = vsel %vm141, %v32, 0
    %v179 = vsel %vm141, %v33, 0
    %v182 = vsel %vm141, %v34, 0
    %v185 = vsel %vm141, %v35, 0
    %v188 = vsel %vm141, %v36, 0
    %190 = vmatpush.msra.mxu0 0.0
    %191 = vmatpush.msra.mxu0 0.0
    %192 = vmatpush.msra.mxu0 0.0
    %193 = vmatpush.msra.mxu0 0.0
    %194 = vmatpush.msra.mxu0 0.0
    %195 = vmatpush.msra.mxu0 0.0
    %196 = vmatpush.msra.mxu0 0.0
    %197 = vmatpush.msra.mxu0 0.0
    %198 = vmatpush.msra.mxu0 %v44
    %199 = vmatpush.msra.mxu0 %v43
    %200 = vmatpush.msra.mxu0 %v42
    %201 = vmatpush.msra.mxu0 %v41
    %202 = vmatpush.msra.mxu0 %v40
    %203 = vmatpush.msra.mxu0 %v39
    %204 = vmatpush.msra.mxu0 %v38
    %205 = vmatpush.msra.mxu0 %v37
    %206 = vmatmul.f32.gmra.mxu0 %v143
    %v207 = vpop.f32.mrf.mxu0
    %v208 = vadd.f32 %v64, %v207
    %209 = vmatmul.f32.gmra.mxu0 %v146
    %v210 = vpop.f32.mrf.mxu0
    %v211 = vadd.f32 %v69, %v210
    %212 = vmatmul.f32.gmra.mxu0 %v149
    %v213 = vpop.f32.mrf.mxu0
    %v214 = vadd.f32 %v74, %v213
    %215 = vmatmul.f32.gmra.mxu0 %v152
    %v216 = vpop.f32.mrf.mxu0
    %v217 = vadd.f32 %v79, %v216
    %218 = vmatmul.f32.gmra.mxu0 %v155
    %v219 = vpop.f32.mrf.mxu0
    %v220 = vadd.f32 %v84, %v219
    %221 = vmatmul.f32.gmra.mxu0 %v158
    %v222 = vpop.f32.mrf.mxu0
    %v223 = vadd.f32 %v89, %v222
    %224 = vmatmul.f32.gmra.mxu0 %v161
    %v225 = vpop.f32.mrf.mxu0
    %v226 = vadd.f32 %v94, %v225
    %227 = vmatmul.f32.gmra.mxu0 %v164
    %v228 = vpop.f32.mrf.mxu0
    %v229 = vadd.f32 %v99, %v228
    %230 = vmatmul.f32.gmra.mxu0 %v167
    %v231 = vpop.f32.mrf.mxu0
    %v232 = vadd.f32 %v104, %v231
    %233 = vmatmul.f32.gmra.mxu0 %v170
    %v234 = vpop.f32.mrf.mxu0
    %v235 = vadd.f32 %v109, %v234
    %236 = vmatmul.f32.gmra.mxu0 %v173
    %v237 = vpop.f32.mrf.mxu0
    %v238 = vadd.f32 %v114, %v237
    %239 = vmatmul.f32.gmra.mxu0 %v176
    %v240 = vpop.f32.mrf.mxu0
    %v241 = vadd.f32 %v119, %v240
    %242 = vmatmul.f32.gmra.mxu0 %v179
    %v243 = vpop.f32.mrf.mxu0
    %v244 = vadd.f32 %v124, %v243
    %245 = vmatmul.f32.gmra.mxu0 %v182
    %v246 = vpop.f32.mrf.mxu0
    %v247 = vadd.f32 %v129, %v246
    %248 = vmatmul.f32.gmra.mxu0 %v185
    %v249 = vpop.f32.mrf.mxu0
    %v250 = vadd.f32 %v134, %v249
    %251 = vmatmul.f32.gmra.mxu0 %v188
    %v252 = vpop.f32.mrf.mxu0
    %v253 = vadd.f32 %v139, %v252
    %254 = vdwg.mxu0
    %v255 = vtanh.pop %v208
    %v256 = vtanh.pop %v211
    %v257 = vtanh.pop %v214
    %v258 = vtanh.pop %v217
    %v259 = vtanh.pop %v220
    %v260 = vtanh.pop %v223
    %v261 = vtanh.pop %v226
    %v262 = vtanh.pop %v229
    %v263 = vtanh.pop %v232
    %v264 = vtanh.pop %v235
    %v265 = vtanh.pop %v238
    %v266 = vtanh.pop %v241
    %v267 = vtanh.pop %v244
    %v268 = vtanh.pop %v247
    %v269 = vtanh.pop %v250
    %v270 = vtanh.pop %v253
    %v271 = vld [vmem:[%s3] sm:$0xff]
    %v272 = vld [vmem:[%s3 + $0x8] sm:$0xff]
    %v273 = vld [vmem:[%s3 + $0x10] sm:$0xff]
    %v274 = vld [vmem:[%s3 + $0x18] sm:$0xff]
    %v275 = vld [vmem:[%s3 + $0x20] sm:$0xff]
    %v276 = vld [vmem:[%s3 + $0x28] sm:$0xff]
    %v277 = vld [vmem:[%s3 + $0x30] sm:$0xff]
    %v278 = vld [vmem:[%s3 + $0x38] sm:$0xff]
    %v279 = vld [vmem:[%s3 + $0x40] sm:$0xff]
    %v280 = vld [vmem:[%s3 + $0x48] sm:$0xff]
    %v281 = vld [vmem:[%s3 + $0x50] sm:$0xff]
    %v282 = vld [vmem:[%s3 + $0x58] sm:$0xff]
    %v283 = vld [vmem:[%s4] sm:$0xff]
    %v284 = vld [vmem:[%s4 + $0x8] sm:$0xff]
    %v285 = vld [vmem:[%s4 + $0x10] sm:$0xff]
    %v286 = vld [vmem:[%s4 + $0x18] sm:$0xff]
    %v287 = vld [vmem:[%s4 + $0x20] sm:$0xff]
    %v288 = vld [vmem:[%s4 + $0x28] sm:$0xff]
    %v289 = vld [vmem:[%s4 + $0x30] sm:$0xff]
    %v290 = vld [vmem:[%s4 + $0x38] sm:$0xff]
    %v291 = vld [vmem:[%s4 + $0x40] sm:$0xff]
    %v292 = vld [vmem:[%s4 + $0x48] sm:$0xff]
    %v293 = vld [vmem:[%s4 + $0x50] sm:$0xff]
    %v294 = vld [vmem:[%s4 + $0x58] sm:$0xff]
    %296 = vset.pattern.permute.xlu0 0
    %297 = vperm.xlu0 %296, %v283
    %v298 = vpop.permute.xlu0 %297
    %301 = vset.pattern.permute.xlu0 0
    %302 = vperm.xlu0 %301, %v284
    %v303 = vpop.permute.xlu0 %302
    %306 = vset.pattern.permute.xlu0 0
    %307 = vperm.xlu0 %306, %v285
    %v308 = vpop.permute.xlu0 %307
    %311 = vset.pattern.permute.xlu0 0
    %312 = vperm.xlu0 %311, %v286
    %v313 = vpop.permute.xlu0 %312
    %316 = vset.pattern.permute.xlu0 0
    %317 = vperm.xlu0 %316, %v287
    %v318 = vpop.permute.xlu0 %317
    %321 = vset.pattern.permute.xlu0 0
    %322 = vperm.xlu0 %321, %v288
    %v323 = vpop.permute.xlu0 %322
    %326 = vset.pattern.permute.xlu0 0
    %327 = vperm.xlu0 %326, %v289
    %v328 = vpop.permute.xlu0 %327
    %331 = vset.pattern.permute.xlu0 0
    %332 = vperm.xlu0 %331, %v290
    %v333 = vpop.permute.xlu0 %332
    %336 = vset.pattern.permute.xlu0 0
    %337 = vperm.xlu0 %336, %v291
    %v338 = vpop.permute.xlu0 %337
    %341 = vset.pattern.permute.xlu0 0
    %342 = vperm.xlu0 %341, %v292
    %v343 = vpop.permute.xlu0 %342
    %346 = vset.pattern.permute.xlu0 0
    %347 = vperm.xlu0 %346, %v293
    %v348 = vpop.permute.xlu0 %347
    %351 = vset.pattern.permute.xlu0 0
    %352 = vperm.xlu0 %351, %v294
    %v353 = vpop.permute.xlu0 %352
    %355 = vmatpush.msra.mxu0 %v270
    %356 = vmatpush.msra.mxu0 %v269
    %357 = vmatpush.msra.mxu0 %v268
    %358 = vmatpush.msra.mxu0 %v267
    %359 = vmatpush.msra.mxu0 %v266
    %360 = vmatpush.msra.mxu0 %v265
    %361 = vmatpush.msra.mxu0 %v264
    %362 = vmatpush.msra.mxu0 %v263
    %363 = vmatpush.msra.mxu0 %v262
    %364 = vmatpush.msra.mxu0 %v261
    %365 = vmatpush.msra.mxu0 %v260
    %366 = vmatpush.msra.mxu0 %v259
    %367 = vmatpush.msra.mxu0 %v258
    %368 = vmatpush.msra.mxu0 %v257
    %369 = vmatpush.msra.mxu0 %v256
    %370 = vmatpush.msra.mxu0 %v255
    %371 = vmatmul.f32.gmra.mxu0 %v271
    %v372 = vpop.f32.mrf.mxu0
    %v373 = vadd.f32 %v298, %v372
    %374 = vmatmul.f32.gmra.mxu0 %v272
    %v375 = vpop.f32.mrf.mxu0
    %v376 = vadd.f32 %v303, %v375
    %377 = vmatmul.f32.gmra.mxu0 %v273
    %v378 = vpop.f32.mrf.mxu0
    %v379 = vadd.f32 %v308, %v378
    %380 = vmatmul.f32.gmra.mxu0 %v274
    %v381 = vpop.f32.mrf.mxu0
    %v382 = vadd.f32 %v313, %v381
    %383 = vmatmul.f32.gmra.mxu0 %v275
    %v384 = vpop.f32.mrf.mxu0
    %v385 = vadd.f32 %v318, %v384
    %386 = vmatmul.f32.gmra.mxu0 %v276
    %v387 = vpop.f32.mrf.mxu0
    %v388 = vadd.f32 %v323, %v387
    %389 = vmatmul.f32.gmra.mxu0 %v277
    %v390 = vpop.f32.mrf.mxu0
    %v391 = vadd.f32 %v328, %v390
    %392 = vmatmul.f32.gmra.mxu0 %v278
    %v393 = vpop.f32.mrf.mxu0
    %v394 = vadd.f32 %v333, %v393
    %395 = vmatmul.f32.gmra.mxu0 %v279
    %v396 = vpop.f32.mrf.mxu0
    %v397 = vadd.f32 %v338, %v396
    %398 = vmatmul.f32.gmra.mxu0 %v280
    %v399 = vpop.f32.mrf.mxu0
    %v400 = vadd.f32 %v343, %v399
    %401 = vmatmul.f32.gmra.mxu0 %v281
    %v402 = vpop.f32.mrf.mxu0
    %v403 = vadd.f32 %v348, %v402
    %404 = vmatmul.f32.gmra.mxu0 %v282
    %v405 = vpop.f32.mrf.mxu0
    %v406 = vadd.f32 %v353, %v405
    %407 = vdwg.mxu0
    %408 = vst [vmem:[#allocation2] sm:$0xff] %v373
    %409 = vst [vmem:[#allocation2 + $0x8] sm:$0xff] %v376
    %410 = vst [vmem:[#allocation2 + $0x10] sm:$0xff] %v379
    %411 = vst [vmem:[#allocation2 + $0x18] sm:$0xff] %v382
    %412 = vst [vmem:[#allocation2 + $0x20] sm:$0xff] %v385
    %413 = vst [vmem:[#allocation2 + $0x28] sm:$0xff] %v388
    %414 = vst [vmem:[#allocation2 + $0x30] sm:$0xff] %v391
    %415 = vst [vmem:[#allocation2 + $0x38] sm:$0xff] %v394
    %416 = vst [vmem:[#allocation2 + $0x40] sm:$0xff] %v397
    %417 = vst [vmem:[#allocation2 + $0x48] sm:$0xff] %v400
    %418 = vst [vmem:[#allocation2 + $0x50] sm:$0xff] %v403
    %419 = vst [vmem:[#allocation2 + $0x58] sm:$0xff] %v406
    // Predicated region
    $region22: #{tpu_custom_call.1} parent=1 // pred_check
      _
    $region23: #{tpu_custom_call.1} parent=1 // pred_check_branch
      %421 = sbr.rel (0) target = $region25
    $region24: #{tpu_custom_call.1} parent=1 // pred_region
      %423 = vsyncadd [#allocation3], 0
      %s424 = sshll.u32 [#allocation2], 4
      %s425 = int_to_ptr.vmem [resolvable:$true] %s424
      %s426 = sshll.u32 %s5, 4
      %s427 = int_to_ptr.hbm [resolvable:$true] %s426
      %432 = dma.vmem_to_hbm [thread:$0]  %s425, 1536, %s427, [#allocation3], 128, 128, 8
    $region25: #{tpu_custom_call.1} parent=1 // pred_fallthru
      _
    // Predicated region
    $region26: #{tpu_custom_call.1} parent=1 // pred_check
      _
    $region27: #{tpu_custom_call.1} parent=1 // pred_check_branch
      %434 = sbr.rel (0) target = $region29
    $region28: #{tpu_custom_call.1} parent=1 // pred_region
      %436 = dma.done [#allocation3], 1536
    $region29: #{tpu_custom_call.1} parent=1 // pred_fallthru
      _
    %437 = vsyncpa [#allocation3], 1

</llo_original>
